<compile_context>
chip_gen: v7x
topology: tpu7x:2x2x1
jax: 0.10.0
libtpu: 0.0.40
codegen_flags: <defaults>
</compile_context>

<pallas_src>
import functools

import jax
import jax.numpy as jnp
from jax.experimental import pallas as pl
from jax.experimental.pallas import tpu as pltpu


# ---------------------------------------------------------------- kernel ----

def moe_kernel(act_ref, emap_ref, x_ref, w13_ref, w2_ref, rw_ref, out_ref,
               acc_ref, *, num_experts):
    # grid = (t, e, f); e and f are reduction axes (acc/out resident across
    # them).  Zero the accumulator on the first (e, f) step of each token
    # tile, write out on the last (e, f) step.
    del emap_ref  # consumed only by the weight index_maps
    t = pl.program_id(0)
    e = pl.program_id(1)
    f = pl.program_id(2)
    last_e = pl.num_programs(1) - 1
    last_f = pl.num_programs(2) - 1

    @pl.when((e == 0) & (f == 0))
    def _():
        acc_ref[...] = jnp.zeros_like(acc_ref)

    # Skip all compute when no token of this tile routed to expert `e`; the
    # weight index_maps re-use the previously fetched block index for such
    # steps, so their weight DMAs are skipped as well.
    @pl.when(act_ref[t * num_experts + e] == 1)
    def _():
        x = x_ref[...]                                              # (tT, H)
        hdim = x_ref.shape[-1]
        h1 = jnp.dot(x, w13_ref[0, 0, :hdim, :],
                     preferred_element_type=jnp.float32)            # (tT, tf)
        h3 = jnp.dot(x, w13_ref[0, 0, hdim:, :],
                     preferred_element_type=jnp.float32)            # (tT, tf)
        gated = (h1 * jax.nn.sigmoid(h1)) * h3                      # SiLU(h1)*h3, f32
        # Fold the per-token routing weight (0 for unrouted tokens) into the
        # (tT, tf) activation — cheaper than scaling the (tT, H) output.
        gated = gated * rw_ref[0].astype(jnp.float32)
        acc_ref[...] += jnp.dot(gated.astype(x.dtype), w2_ref[0, 0],
                                preferred_element_type=jnp.float32)

    @pl.when((e == last_e) & (f == last_f))
    def _():
        out_ref[...] = acc_ref[...].astype(out_ref.dtype)


# ---------------------------------------------------------------- wrapper ---

def _round_up(x, m):
    return ((x + m - 1) // m) * m


def _pick_ffn_tile(ffn_dim, target):
    """Largest divisor of ffn_dim that is <= target and a multiple of 128; else ffn_dim."""
    if ffn_dim <= target:
        return ffn_dim
    d = (target // 128) * 128
    while d >= 128:
        if ffn_dim % d == 0:
            return d
        d -= 128
    return ffn_dim


def _tpu_tiling_defaults():
    """(token_tile, ffn_tile, vmem_limit_bytes) sized for the local chip's VMEM."""
    try:
        vmem_bytes = pltpu.get_tpu_info().vmem_capacity_bytes
    except Exception:
        vmem_bytes = 64 * 1024 * 1024                 # conservative fallback
    if vmem_bytes >= 100 * 1024 * 1024:               # v5e / v6e: 128 MiB physical
        return 1024, 512, 96 * 1024 * 1024
    return 512, 256, 52 * 1024 * 1024                 # v7x: 64 MiB per TensorCore


def mixtral_sparse_moe(hidden_states, gate_w, w1, w3, w2, top_k,
                       token_tile=None, ffn_tile=None):
    """hidden_states: (B, S, H); gate_w: (E, H); w1,w3: (E,H,F); w2: (E,F,H)."""
    B, S, H = hidden_states.shape
    T = B * S
    E = gate_w.shape[0]
    F_ = w1.shape[-1]
    x = hidden_states.reshape(T, H)

    tt_def, tf_def, vmem_limit = _tpu_tiling_defaults()
    token_tile = token_tile or tt_def
    ffn_tile = ffn_tile or tf_def

    # ---- router: tiny GEMM (N = E = 8), MXU-hostile -> leave to XLA ----
    router_logits = jnp.dot(x, gate_w.T)

    # ---- routing glue (softmax / top-k / renormalize) ----
    routing = jax.nn.softmax(router_logits.astype(jnp.float32), axis=-1)
    routing_weights, selected_experts = jax.lax.top_k(routing, top_k)
    routing_weights = routing_weights / routing_weights.sum(-1, keepdims=True)
    routing_weights = routing_weights.astype(x.dtype)

    # ---- tiles + pad tokens to a tile multiple (pad rows get rw = 0) ----
    tT = min(token_tile, _round_up(T, 8))
    T_pad = _round_up(T, tT)
    nT = T_pad // tT
    tf = _pick_ffn_tile(F_, ffn_tile)
    nF = F_ // tf

    pad = T_pad - T
    if pad:
        x_p = jnp.pad(x, ((0, pad), (0, 0)))
        sel_p = jnp.pad(selected_experts, ((0, pad), (0, 0)), constant_values=-1)
        rwk_p = jnp.pad(routing_weights, ((0, pad), (0, 0)))
    else:
        x_p, sel_p, rwk_p = x, selected_experts, routing_weights

    # Dense expert-major routing-weight map via one-hot compare-and-sum
    # (avoids XLA scatter, which serializes on TPU).  Pad rows (-1) match
    # no expert and therefore get weight 0 everywhere.
    onehot = sel_p[None, :, :] == jnp.arange(E, dtype=sel_p.dtype)[:, None, None]  # (E, T_pad, K)
    rw = jnp.where(onehot, rwk_p[None, :, :], 0).sum(axis=-1)                      # (E, T_pad)
    rw = rw.astype(x.dtype).reshape(E, T_pad, 1)

    # ---- scalar-prefetched expert-skip tables (grid order: t outer, e inner) ----
    # active[t*E + e] == 1 iff any token of tile t routed to expert e.
    # emap[t*E + e]   == expert block to fetch: e when active, else the most
    # recently fetched expert, so inactive steps issue no new weight DMA.
    tok_hit = onehot.any(axis=-1)                                    # (E, T_pad)
    tile_hit = tok_hit.reshape(E, nT, tT).any(axis=-1)               # (E, nT)
    active = tile_hit.T.reshape(-1).astype(jnp.int32)                # (nT*E,)
    steps = jnp.arange(nT * E, dtype=jnp.int32)
    last_pos = jax.lax.cummax(jnp.where(active > 0, steps, -1), axis=0)
    emap = jnp.where(last_pos >= 0, last_pos % E, 0).astype(jnp.int32)

    # ---- weight layout: every grid block = one contiguous HBM chunk; w1||w3
    # concatenated into a single stream.  (Do once at load time in a real model.)
    w1_r = w1.reshape(E, H, nF, tf).transpose(0, 2, 1, 3)            # (E, nF, H, tf)
    w3_r = w3.reshape(E, H, nF, tf).transpose(0, 2, 1, 3)            # (E, nF, H, tf)
    w13 = jnp.concatenate([w1_r, w3_r], axis=2)                      # (E, nF, 2H, tf)
    w2_r = w2.reshape(E, nF, tf, H)                                  # (E, nF, tf, H)

    def x_map(t, e, f, act_s, emap_s):
        return (t, 0)

    def out_map(t, e, f, act_s, emap_s):
        return (t, 0)

    def rw_map(t, e, f, act_s, emap_s):
        return (e, t, 0)

    def w13_map(t, e, f, act_s, emap_s):
        a = act_s[t * E + e]
        return (emap_s[t * E + e], f * a + (nF - 1) * (1 - a), 0, 0)

    def w2_map(t, e, f, act_s, emap_s):
        a = act_s[t * E + e]
        return (emap_s[t * E + e], f * a + (nF - 1) * (1 - a), 0, 0)

    kernel = functools.partial(moe_kernel, num_experts=E)

    out = pl.pallas_call(
        kernel,
        out_shape=jax.ShapeDtypeStruct((T_pad, H), x.dtype),
        grid_spec=pltpu.PrefetchScalarGridSpec(
            num_scalar_prefetch=2,
            grid=(nT, E, nF),
            in_specs=[
                pl.BlockSpec((tT, H), x_map),                 # x
                pl.BlockSpec((1, 1, 2 * H, tf), w13_map),     # w1 || w3
                pl.BlockSpec((1, 1, tf, H), w2_map),          # w2
                pl.BlockSpec((1, tT, 1), rw_map),             # routing weights
            ],
            out_specs=pl.BlockSpec((tT, H), out_map),
            scratch_shapes=[pltpu.VMEM((tT, H), jnp.float32)],
        ),
        compiler_params=pltpu.CompilerParams(
            dimension_semantics=("parallel", "arbitrary", "arbitrary"),
            vmem_limit_bytes=vmem_limit,
        ),
    )(active, emap, x_p, w13, w2_r, rw)

    if pad:
        out = out[:T]
    return out.reshape(B, S, H), router_logits


# ------------------------------------------------------------- reference ----

def moe_reference(hidden_states, gate_w, w1, w3, w2, top_k):
    B, S, H = hidden_states.shape
    x = hidden_states.reshape(-1, H)
    logits = x @ gate_w.T
    routing = jax.nn.softmax(logits.astype(jnp.float32), axis=-1)
    rw, sel = jax.lax.top_k(routing, top_k)
    rw = (rw / rw.sum(-1, keepdims=True)).astype(x.dtype)
    T = x.shape[0]
    E = gate_w.shape[0]
    rw_full = jnp.zeros((T, E), x.dtype).at[jnp.arange(T)[:, None], sel].add(rw)
    out = jnp.zeros_like(x)
    for e in range(E):
        h1 = x @ w1[e]
        h3 = x @ w3[e]
        act = jax.nn.silu(h1) * h3
        out = out + (act @ w2[e]) * rw_full[:, e:e + 1]
    return out.reshape(B, S, H), logits


# ------------------------------------------------------------------ main ----

if __name__ == "__main__":
    def run_case(B, S, H, F_, E, top_k, key, **tile_kwargs):
        kx, kg, k1, k3, k2 = jax.random.split(key, 5)
        hidden_states = jax.random.normal(kx, (B, S, H), dtype=jnp.float32)
        gate_w = 0.05 * jax.random.normal(kg, (E, H), dtype=jnp.float32)   # (out, in)
        w1 = 0.05 * jax.random.normal(k1, (E, H, F_), dtype=jnp.float32)   # pre-transposed
        w3 = 0.05 * jax.random.normal(k3, (E, H, F_), dtype=jnp.float32)
        w2 = 0.05 * jax.random.normal(k2, (E, F_, H), dtype=jnp.float32)

        out, logits = mixtral_sparse_moe(hidden_states, gate_w, w1, w3, w2,
                                         top_k, **tile_kwargs)
        out = jax.block_until_ready(out)
        logits = jax.block_until_ready(logits)

        ref_out, ref_logits = moe_reference(hidden_states, gate_w, w1, w3, w2, top_k)
        assert out.shape == (B, S, H) and logits.shape == (B * S, E)
        assert jnp.allclose(out, ref_out, atol=1e-5, rtol=1e-5), \
            float(jnp.max(jnp.abs(out - ref_out)))
        assert jnp.allclose(logits, ref_logits, atol=1e-5, rtol=1e-5)

    key = jax.random.PRNGKey(0)
    key_a, key_b = jax.random.split(key)

    # small config: hidden=32, intermediate=64, experts=8, top_k=2, B=2, S=8
    run_case(2, 8, 32, 64, 8, 2, key_a)

    # ragged shape: exercises token padding, multiple token tiles, f-tiling and
    # the scalar-prefetched expert-skip / weight-DMA-reuse path.
    run_case(2, 13, 32, 256, 8, 2, key_b, token_tile=8, ffn_tile=128)

    print("KERNEL_OK")
</pallas_src>

<mosaic_0001>
module attributes {stable_mosaic.version = 11 : i64} {
  func.func @moe_kernel(%arg0: i32, %arg1: i32, %arg2: i32, %arg3: memref<8xi32, #tpu.memory_space<smem>>, %arg4: memref<8xi32, #tpu.memory_space<smem>>, %arg5: memref<16x32xf32, #tpu.memory_space<vmem>>, %arg6: memref<1x1x64x64xf32, #tpu.memory_space<vmem>>, %arg7: memref<1x1x64x32xf32, #tpu.memory_space<vmem>>, %arg8: memref<1x16x1xf32, #tpu.memory_space<vmem>>, %arg9: memref<16x32xf32, #tpu.memory_space<vmem>>, %arg10: memref<16x32xf32, #tpu.memory_space<vmem>>) attributes {dimension_semantics = [#tpu.dimension_semantics<parallel>, #tpu.dimension_semantics<arbitrary>, #tpu.dimension_semantics<arbitrary>], iteration_bounds = array<i64: 1, 8, 1>, scalar_prefetch = 2 : i64, scratch_operands = 1 : i64, tpu.core_type = #tpu.core_type<tc>, window_params = [{transform_indices = @transform_0, window_bounds = array<i64: 16, 32>}, {transform_indices = @transform_1, window_bounds = array<i64: 1, 1, 64, 64>}, {transform_indices = @transform_2, window_bounds = array<i64: 1, 1, 64, 32>}, {transform_indices = @transform_3, window_bounds = array<i64: 1, 16, 1>}, {transform_indices = @transform_4, window_bounds = array<i64: 16, 32>}]} {
    %c0_i32 = arith.constant 0 : i32
    %0 = arith.cmpi eq, %arg1, %c0_i32 : i32
    %c0_i32_0 = arith.constant 0 : i32
    %1 = arith.cmpi eq, %arg2, %c0_i32_0 : i32
    %2 = arith.andi %0, %1 : i1
    %3 = arith.extui %2 : i1 to i32
    %c0_i32_1 = arith.constant 0 : i32
    %4 = arith.cmpi ne, %3, %c0_i32_1 : i32
    scf.if %4 {
      %cst = arith.constant 0.000000e+00 : f32
      %17 = vector.broadcast %cst : f32 to vector<16x32xf32>
      %c0 = arith.constant 0 : index
      %c0_5 = arith.constant 0 : index
      %18 = vector.load %arg10[%c0, %c0_5] : memref<16x32xf32, #tpu.memory_space<vmem>>, vector<16x32xf32>
      tpu.vector_store %arg10[%c0, %c0_5], %17 {strides = array<i32>} : memref<16x32xf32, #tpu.memory_space<vmem>>, vector<16x32xf32>,
    } else {
    }
    %c8_i32 = arith.constant 8 : i32
    %5 = arith.muli %arg0, %c8_i32 : i32
    %6 = arith.addi %5, %arg1 : i32
    %7 = arith.index_cast %6 : i32 to index
    %8 = memref.load %arg3[%7] : memref<8xi32, #tpu.memory_space<smem>>
    %c1_i32 = arith.constant 1 : i32
    %9 = arith.cmpi eq, %8, %c1_i32 : i32
    %10 = arith.extui %9 : i1 to i32
    %c0_i32_2 = arith.constant 0 : i32
    %11 = arith.cmpi ne, %10, %c0_i32_2 : i32
    scf.if %11 {
      %c0 = arith.constant 0 : index
      %c0_5 = arith.constant 0 : index
      %17 = vector.load %arg5[%c0, %c0_5] : memref<16x32xf32, #tpu.memory_space<vmem>>, vector<16x32xf32>
      %c0_6 = arith.constant 0 : index
      %c0_7 = arith.constant 0 : index
      %c0_8 = arith.constant 0 : index
      %c0_9 = arith.constant 0 : index
      %18 = vector.load %arg6[%c0_6, %c0_7, %c0_8, %c0_9] : memref<1x1x64x64xf32, #tpu.memory_space<vmem>>, vector<1x1x32x64xf32>
      %19 = vector.shape_cast %18 : vector<1x1x32x64xf32> to vector<32x64xf32>
      %cst = arith.constant dense<0.000000e+00> : vector<16x64xf32>
      %20 = tpu.matmul %17, %19, %cst {dimension_numbers = #tpu.dot_dimension_numbers<[1], [0], [0], [1], [0, 0, 1, 1], [], []>} : vector<16x32xf32>, vector<32x64xf32>, vector<16x64xf32> -> vector<16x64xf32>
      %c0_10 = arith.constant 0 : index
      %c0_11 = arith.constant 0 : index
      %c32 = arith.constant 32 : index
      %c0_12 = arith.constant 0 : index
      %21 = vector.load %arg6[%c0_10, %c0_11, %c32, %c0_12] : memref<1x1x64x64xf32, #tpu.memory_space<vmem>>, vector<1x1x32x64xf32>
      %22 = vector.shape_cast %21 : vector<1x1x32x64xf32> to vector<32x64xf32>
      %cst_13 = arith.constant dense<0.000000e+00> : vector<16x64xf32>
      %23 = tpu.matmul %17, %22, %cst_13 {dimension_numbers = #tpu.dot_dimension_numbers<[1], [0], [0], [1], [0, 0, 1, 1], [], []>} : vector<16x32xf32>, vector<32x64xf32>, vector<16x64xf32> -> vector<16x64xf32>
      %24 = arith.negf %20 : vector<16x64xf32>
      %25 = math.exp %24 : vector<16x64xf32>
      %cst_14 = arith.constant 1.000000e+00 : f32
      %26 = vector.broadcast %cst_14 : f32 to vector<16x64xf32>
      %27 = arith.addf %26, %25 : vector<16x64xf32>
      %28 = arith.divf %26, %27 : vector<16x64xf32>
      %29 = arith.mulf %20, %28 : vector<16x64xf32>
      %30 = arith.mulf %29, %23 : vector<16x64xf32>
      %c0_15 = arith.constant 0 : index
      %c0_16 = arith.constant 0 : index
      %c0_17 = arith.constant 0 : index
      %31 = vector.load %arg8[%c0_15, %c0_16, %c0_17] : memref<1x16x1xf32, #tpu.memory_space<vmem>>, vector<1x16x1xf32>
      %32 = vector.shape_cast %31 : vector<1x16x1xf32> to vector<16x1xf32>
      %33 = vector.broadcast %32 : vector<16x1xf32> to vector<16x64xf32>
      %34 = arith.mulf %30, %33 : vector<16x64xf32>
      %c0_18 = arith.constant 0 : index
      %c0_19 = arith.constant 0 : index
      %35 = vector.load %arg10[%c0_18, %c0_19] : memref<16x32xf32, #tpu.memory_space<vmem>>, vector<16x32xf32>
      %c0_20 = arith.constant 0 : index
      %c0_21 = arith.constant 0 : index
      %c0_22 = arith.constant 0 : index
      %c0_23 = arith.constant 0 : index
      %36 = vector.load %arg7[%c0_20, %c0_21, %c0_22, %c0_23] : memref<1x1x64x32xf32, #tpu.memory_space<vmem>>, vector<1x1x64x32xf32>
      %37 = vector.shape_cast %36 : vector<1x1x64x32xf32> to vector<64x32xf32>
      %cst_24 = arith.constant dense<0.000000e+00> : vector<16x32xf32>
      %38 = tpu.matmul %34, %37, %cst_24 {dimension_numbers = #tpu.dot_dimension_numbers<[1], [0], [0], [1], [0, 0, 1, 1], [], []>} : vector<16x64xf32>, vector<64x32xf32>, vector<16x32xf32> -> vector<16x32xf32>
      %39 = arith.addf %35, %38 : vector<16x32xf32>
      %c0_25 = arith.constant 0 : index
      %c0_26 = arith.constant 0 : index
      %40 = vector.load %arg10[%c0_25, %c0_26] : memref<16x32xf32, #tpu.memory_space<vmem>>, vector<16x32xf32>
      tpu.vector_store %arg10[%c0_25, %c0_26], %39 {strides = array<i32>} : memref<16x32xf32, #tpu.memory_space<vmem>>, vector<16x32xf32>,
    } else {
    }
    %c7_i32 = arith.constant 7 : i32
    %12 = arith.cmpi eq, %arg1, %c7_i32 : i32
    %c0_i32_3 = arith.constant 0 : i32
    %13 = arith.cmpi eq, %arg2, %c0_i32_3 : i32
    %14 = arith.andi %12, %13 : i1
    %15 = arith.extui %14 : i1 to i32
    %c0_i32_4 = arith.constant 0 : i32
    %16 = arith.cmpi ne, %15, %c0_i32_4 : i32
    scf.if %16 {
      %c0 = arith.constant 0 : index
      %c0_5 = arith.constant 0 : index
      %17 = vector.load %arg10[%c0, %c0_5] : memref<16x32xf32, #tpu.memory_space<vmem>>, vector<16x32xf32>
      %c0_6 = arith.constant 0 : index
      %c0_7 = arith.constant 0 : index
      %18 = vector.load %arg9[%c0_6, %c0_7] : memref<16x32xf32, #tpu.memory_space<vmem>>, vector<16x32xf32>
      tpu.vector_store %arg9[%c0_6, %c0_7], %17 {strides = array<i32>} : memref<16x32xf32, #tpu.memory_space<vmem>>, vector<16x32xf32>,
    } else {
    }
    return
  }
  func.func @transform_0(%arg0: i32, %arg1: i32, %arg2: i32, %arg3: memref<8xi32, #tpu.memory_space<smem>>, %arg4: memref<8xi32, #tpu.memory_space<smem>>) -> (i32, i32) {
    %c0_i32 = arith.constant 0 : i32
    %c0_i32_0 = arith.constant 0 : i32
    return %arg0, %c0_i32 : i32, i32
  }
  func.func @transform_1(%arg0: i32, %arg1: i32, %arg2: i32, %arg3: memref<8xi32, #tpu.memory_space<smem>>, %arg4: memref<8xi32, #tpu.memory_space<smem>>) -> (i32, i32, i32, i32) {
    %c8_i32 = arith.constant 8 : i32
    %0 = arith.muli %arg0, %c8_i32 : i32
    %1 = arith.addi %0, %arg1 : i32
    %2 = arith.index_cast %1 : i32 to index
    %3 = memref.load %arg3[%2] : memref<8xi32, #tpu.memory_space<smem>>
    %c8_i32_0 = arith.constant 8 : i32
    %4 = arith.muli %arg0, %c8_i32_0 : i32
    %5 = arith.addi %4, %arg1 : i32
    %6 = arith.index_cast %5 : i32 to index
    %7 = memref.load %arg4[%6] : memref<8xi32, #tpu.memory_space<smem>>
    %8 = arith.muli %arg2, %3 : i32
    %c1_i32 = arith.constant 1 : i32
    %9 = arith.subi %c1_i32, %3 : i32
    %c0_i32 = arith.constant 0 : i32
    %10 = arith.muli %c0_i32, %9 : i32
    %11 = arith.addi %8, %10 : i32
    %c0_i32_1 = arith.constant 0 : i32
    %c0_i32_2 = arith.constant 0 : i32
    %c0_i32_3 = arith.constant 0 : i32
    return %7, %11, %c0_i32_1, %c0_i32_2 : i32, i32, i32, i32
  }
  func.func @transform_2(%arg0: i32, %arg1: i32, %arg2: i32, %arg3: memref<8xi32, #tpu.memory_space<smem>>, %arg4: memref<8xi32, #tpu.memory_space<smem>>) -> (i32, i32, i32, i32) {
    %c8_i32 = arith.constant 8 : i32
    %0 = arith.muli %arg0, %c8_i32 : i32
    %1 = arith.addi %0, %arg1 : i32
    %2 = arith.index_cast %1 : i32 to index
    %3 = memref.load %arg3[%2] : memref<8xi32, #tpu.memory_space<smem>>
    %c8_i32_0 = arith.constant 8 : i32
    %4 = arith.muli %arg0, %c8_i32_0 : i32
    %5 = arith.addi %4, %arg1 : i32
    %6 = arith.index_cast %5 : i32 to index
    %7 = memref.load %arg4[%6] : memref<8xi32, #tpu.memory_space<smem>>
    %8 = arith.muli %arg2, %3 : i32
    %c1_i32 = arith.constant 1 : i32
    %9 = arith.subi %c1_i32, %3 : i32
    %c0_i32 = arith.constant 0 : i32
    %10 = arith.muli %c0_i32, %9 : i32
    %11 = arith.addi %8, %10 : i32
    %c0_i32_1 = arith.constant 0 : i32
    %c0_i32_2 = arith.constant 0 : i32
    %c0_i32_3 = arith.constant 0 : i32
    return %7, %11, %c0_i32_1, %c0_i32_2 : i32, i32, i32, i32
  }
  func.func @transform_3(%arg0: i32, %arg1: i32, %arg2: i32, %arg3: memref<8xi32, #tpu.memory_space<smem>>, %arg4: memref<8xi32, #tpu.memory_space<smem>>) -> (i32, i32, i32) {
    %c0_i32 = arith.constant 0 : i32
    %c0_i32_0 = arith.constant 0 : i32
    return %arg1, %arg0, %c0_i32 : i32, i32, i32
  }
  func.func @transform_4(%arg0: i32, %arg1: i32, %arg2: i32, %arg3: memref<8xi32, #tpu.memory_space<smem>>, %arg4: memref<8xi32, #tpu.memory_space<smem>>) -> (i32, i32) {
    %c0_i32 = arith.constant 0 : i32
    %c0_i32_0 = arith.constant 0 : i32
    return %arg0, %c0_i32 : i32, i32
  }
}

</mosaic_0001>

<llo_original>
// kernel: tpu_custom_call.1
$region0: #{tpu_custom_call.1}
  #allocation0 [shape = 'u32[]', space=smem, size = 0x4, offset = 0x4, fixed_abs, tag = 'smem constant byte address 0x4 - core index']
  #allocation1 [shape = 'u32[144,128]{1,0:T(1,128)}', space=vmem, size = 0x12000, scoped, tag = 'internal scratch']
  #allocation2 [shape = 'f32[16,32]{1,0:T(8,128)}', space=vmem, size = 0x2000, scoped, tag = 'scratch operand']
  #allocation3 [shape = 's32[1]{0}', space=sflag, size = 0x4, scoped, tag = 'scoped memory for tpu_custom_call.1']
  #allocation4 [shape = 'u8[512]{0}', space=smem, size = 0x200, scoped, tag = 'prefetched SMEM operand 0']
  #allocation5 [shape = 'u8[512]{0}', space=smem, size = 0x200, scoped, tag = 'prefetched SMEM operand 1']
  %s0 = inlined_call_operand.vmem [shape: s32[8], index: 0, kind: input, shape index: {}]
  %s1 = inlined_call_operand.vmem [shape: s32[8], index: 1, kind: input, shape index: {}]
  %s2 = inlined_call_operand.vmem [shape: f32[16,32], index: 2, kind: input, shape index: {}]
  %s3 = inlined_call_operand.vmem [shape: f32[8,1,64,64], index: 3, kind: input, shape index: {}]
  %s4 = inlined_call_operand.vmem [shape: f32[8,1,64,32], index: 4, kind: input, shape index: {}]
  %s5 = inlined_call_operand.vmem [shape: f32[8,16,1], index: 5, kind: input, shape index: {}]
  %s6 = inlined_call_operand.hbm [shape: f32[16,32], index: 6, kind: output, shape index: {}]
  %s7 = sld [smem:[#allocation0]]
  $region61: #{tpu_custom_call.1} parent=0
    _
  %s9 = ssub.s32 1, %s7
  %s10 = scalar_select 0, %s9, %s7
  %s11 = sshll.u32 %s0, 4
  %s12 = int_to_ptr.vmem [resolvable:$true] %s11
  %14 = dma.vmem_to_smem %s12, 16, [#allocation4], [#allocation3]
  %s15 = sshll.u32 %s1, 4
  %s16 = int_to_ptr.vmem [resolvable:$true] %s15
  %18 = dma.vmem_to_smem %s16, 16, [#allocation5], [#allocation3]
  %19 = dma.done [#allocation3], 32
  %20 = sfence
  $region1: #{tpu_custom_call.1} parent=0
    #allocation6 [shape = 'u8[8192]{0}', space=vmem, size = 0x2000, scoped, tag = 'output window, operand 0, single buffered']
    #allocation7 [shape = 's32[2]{0}', space=sflag, size = 0x8, scoped, tag = 'scoped memory for tpu_custom_call.1']
    %21 = vsyncpa [#allocation7], 0
    loop: start=0, step=1, limit=10
    $region2: #{tpu_custom_call.1} parent=1 // loop_pre_header
      _
    $region3: #{tpu_custom_call.1} parent=1 // loop_header
      %s23 = sphi 0, %s27
      %p24 = scmp.ge.s32.totalorder %s23, 10
      %s30 = sphi 0, %s49
      %s31 = sphi 0, %s45
      %s32 = sphi 0, %s41
      %s33 = sphi 0, %s30
      %s34 = sphi 0, %s31
      %s35 = sphi 0, %s32
      %s36 = sphi 0, %s33
      %s37 = sphi 0, %s34
      %s38 = sphi 0, %s35
      %s52 = sphi 0, %s54
      %s55 = sphi 0, %s52
      %s56 = sphi 0, %s55
      %s72 = sphi 0, %s56
      %s90 = sphi 0, %s92
      %s93 = sphi 0, %s90
      %s94 = sphi 0, %s93
      %s110 = sphi 0, %s94
      %s128 = sphi 0, %s130
      %s131 = sphi 0, %s128
      %s132 = sphi 0, %s131
      %s148 = sphi 0, %s132
      %s156 = sphi 0, %s158
      %s159 = sphi 0, %s156
      %s160 = sphi 0, %s159
      %s176 = sphi 0, %s160
      %s182 = sphi 0, %s184
      %s185 = sphi 0, %s182
      %s186 = sphi 0, %s185
      %s202 = sphi 0, %s186
    $region4: #{tpu_custom_call.1} parent=1 // loop_header_branch
      %26 = sbr.rel (%p24) target = $region8
    $region5: #{tpu_custom_call.1} parent=1 // loop_body
      %s28 = ssub.s32 %s23, 1
      %s29 = ssub.s32 %s23, 2
      %s39 = sadd.s32 1, %s32
      %p40 = scmp.ge.s32.totalorder %s39, 1
      %s41 = scalar_select %p40, 0, %s39
      %s42 = sadd.s32 1, %s31
      %s43 = scalar_select %p40, %s42, %s31
      %p44 = scmp.ge.s32.totalorder %s43, 8
      %s45 = scalar_select %p44, 0, %s43
      %s46 = sadd.s32 1, %s30
      %s47 = scalar_select %p44, %s46, %s30
      %p48 = scmp.ge.s32.totalorder %s47, 1
      %s49 = scalar_select %p48, 0, %s47
      %s50 = ssub.s32 %s30, %s49
      %p51 = scmp.eq.s32.totalorder %s50, 0
      %s53 = sadd.s32 %s52, 1
      %s54 = scalar_select %p51, %s52, %s53
      %p57 = pneg %p51
      %p58 = scmp.eq.s32.totalorder %s23, 7
      %p59 = por %p57, %p58
      %p60 = scmp.ne.s32.totalorder %s52, %s55
      %p61 = scmp.eq.s32.totalorder %s23, 0
      %p62 = por %p60, %p61
      %p63 = scmp.ne.s32.totalorder %s52, %s55
      %p64 = scmp.eq.s32.totalorder %s28, 7
      %p65 = por %p63, %p64
      %p66 = scmp.ne.s32.totalorder %s55, %s56
      %p67 = scmp.eq.s32.totalorder %s28, 0
      %p68 = por %p66, %p67
      %p69 = scmp.ne.s32.totalorder %s55, %s56
      %p70 = scmp.eq.s32.totalorder %s29, 7
      %p71 = por %p69, %p70
      %p73 = scmp.ne.s32.totalorder %s56, %s72
      %p74 = scmp.eq.s32.totalorder %s29, 0
      %p75 = por %p73, %p74
      %s76 = smul.u32 %s30, 8
      %s77 = sadd.s32 %s76, %s31
      %s78 = sld [smem:[#allocation4 + %s77]]
      %s79 = sld [smem:[#allocation5 + %s77]]
      %s80 = smul.u32 %s32, %s78
      %s81 = smul.u32 %s49, 8
      %s82 = sadd.s32 %s81, %s45
      %s83 = sld [smem:[#allocation4 + %s82]]
      %s84 = sld [smem:[#allocation5 + %s82]]
      %s85 = smul.u32 %s41, %s83
      %s86 = ssub.s32 %s79, %s84
      %s87 = ssub.s32 %s80, %s85
      %s88 = sor.u32 %s86, %s87
      %p89 = scmp.eq.s32.totalorder %s88, 0
      %s91 = sadd.s32 %s90, 1
      %s92 = scalar_select %p89, %s90, %s91
      %p95 = pneg %p89
      %p96 = scmp.eq.s32.totalorder %s23, 7
      %p97 = por %p95, %p96
      %p98 = scmp.ne.s32.totalorder %s90, %s93
      %p99 = scmp.eq.s32.totalorder %s23, 0
      %p100 = por %p98, %p99
      %p101 = scmp.ne.s32.totalorder %s90, %s93
      %p102 = scmp.eq.s32.totalorder %s28, 7
      %p103 = por %p101, %p102
      %p104 = scmp.ne.s32.totalorder %s93, %s94
      %p105 = scmp.eq.s32.totalorder %s28, 0
      %p106 = por %p104, %p105
      %p107 = scmp.ne.s32.totalorder %s93, %s94
      %p108 = scmp.eq.s32.totalorder %s29, 7
      %p109 = por %p107, %p108
      %p111 = scmp.ne.s32.totalorder %s94, %s110
      %p112 = scmp.eq.s32.totalorder %s29, 0
      %p113 = por %p111, %p112
      %s114 = smul.u32 %s30, 8
      %s115 = sadd.s32 %s114, %s31
      %s116 = sld [smem:[#allocation4 + %s115]]
      %s117 = sld [smem:[#allocation5 + %s115]]
      %s118 = smul.u32 %s32, %s116
      %s119 = smul.u32 %s49, 8
      %s120 = sadd.s32 %s119, %s45
      %s121 = sld [smem:[#allocation4 + %s120]]
      %s122 = sld [smem:[#allocation5 + %s120]]
      %s123 = smul.u32 %s41, %s121
      %s124 = ssub.s32 %s117, %s122
      %s125 = ssub.s32 %s118, %s123
      %s126 = sor.u32 %s124, %s125
      %p127 = scmp.eq.s32.totalorder %s126, 0
      %s129 = sadd.s32 %s128, 1
      %s130 = scalar_select %p127, %s128, %s129
      %p133 = pneg %p127
      %p134 = scmp.eq.s32.totalorder %s23, 7
      %p135 = por %p133, %p134
      %p136 = scmp.ne.s32.totalorder %s128, %s131
      %p137 = scmp.eq.s32.totalorder %s23, 0
      %p138 = por %p136, %p137
      %p139 = scmp.ne.s32.totalorder %s128, %s131
      %p140 = scmp.eq.s32.totalorder %s28, 7
      %p141 = por %p139, %p140
      %p142 = scmp.ne.s32.totalorder %s131, %s132
      %p143 = scmp.eq.s32.totalorder %s28, 0
      %p144 = por %p142, %p143
      %p145 = scmp.ne.s32.totalorder %s131, %s132
      %p146 = scmp.eq.s32.totalorder %s29, 7
      %p147 = por %p145, %p146
      %p149 = scmp.ne.s32.totalorder %s132, %s148
      %p150 = scmp.eq.s32.totalorder %s29, 0
      %p151 = por %p149, %p150
      %s152 = ssub.s32 %s31, %s45
      %s153 = ssub.s32 %s30, %s49
      %s154 = sor.u32 %s152, %s153
      %p155 = scmp.eq.s32.totalorder %s154, 0
      %s157 = sadd.s32 %s156, 1
      %s158 = scalar_select %p155, %s156, %s157
      %p161 = pneg %p155
      %p162 = scmp.eq.s32.totalorder %s23, 7
      %p163 = por %p161, %p162
      %p164 = scmp.ne.s32.totalorder %s156, %s159
      %p165 = scmp.eq.s32.totalorder %s23, 0
      %p166 = por %p164, %p165
      %p167 = scmp.ne.s32.totalorder %s156, %s159
      %p168 = scmp.eq.s32.totalorder %s28, 7
      %p169 = por %p167, %p168
      %p170 = scmp.ne.s32.totalorder %s159, %s160
      %p171 = scmp.eq.s32.totalorder %s28, 0
      %p172 = por %p170, %p171
      %p173 = scmp.ne.s32.totalorder %s159, %s160
      %p174 = scmp.eq.s32.totalorder %s29, 7
      %p175 = por %p173, %p174
      %p177 = scmp.ne.s32.totalorder %s160, %s176
      %p178 = scmp.eq.s32.totalorder %s29, 0
      %p179 = por %p177, %p178
      %s180 = ssub.s32 %s30, %s49
      %p181 = scmp.eq.s32.totalorder %s180, 0
      %s183 = sadd.s32 %s182, 1
      %s184 = scalar_select %p181, %s182, %s183
      %p187 = pneg %p181
      %p188 = scmp.eq.s32.totalorder %s23, 7
      %p189 = por %p187, %p188
      %p190 = scmp.ne.s32.totalorder %s182, %s185
      %p191 = scmp.eq.s32.totalorder %s23, 0
      %p192 = por %p190, %p191
      %p193 = scmp.ne.s32.totalorder %s182, %s185
      %p194 = scmp.eq.s32.totalorder %s28, 7
      %p195 = por %p193, %p194
      %p196 = scmp.ne.s32.totalorder %s185, %s186
      %p197 = scmp.eq.s32.totalorder %s28, 0
      %p198 = por %p196, %p197
      %p199 = scmp.ne.s32.totalorder %s185, %s186
      %p200 = scmp.eq.s32.totalorder %s29, 7
      %p201 = por %p199, %p200
      %p203 = scmp.ne.s32.totalorder %s186, %s202
      %p204 = scmp.eq.s32.totalorder %s29, 0
      %p205 = por %p203, %p204
      %p206 = scmp.le.s32.totalorder 1, %s23
      %p207 = scmp.lt.s32.totalorder %s23, 9
      %p208 = pnand %p206, %p207
      %p209 = pneg %p208
      // Predicated region
      $region9: #{tpu_custom_call.1} parent=5 // pred_check
        _
      $region10: #{tpu_custom_call.1} parent=5 // pred_check_branch
        %211 = sbr.rel (%p208) target = $region12
      $region11: #{tpu_custom_call.1} parent=5 // pred_region
        %s212 = ssub.s32 %s23, 1
        // Predicated region
        $region13: #{tpu_custom_call.1} parent=11 // pred_check
          %p213 = pneg %p68
        $region14: #{tpu_custom_call.1} parent=11 // pred_check_branch
          %215 = sbr.rel (%p213) target = $region16
        $region15: #{tpu_custom_call.1} parent=11 // pred_region
          %s216 = smul.u32 2, %s33
          %p217 = scmp.lt.s32.totalorder %s216, 1
          %s218 = scalar_select %p217, %s216, 1
          %s219 = smul.addr %s218, 8
          %s220 = scalar_lea.vmem %s2, %s219
          %s221 = smul.u32 2, %s33
        $region16: #{tpu_custom_call.1} parent=11 // pred_fallthru
          _
      $region12: #{tpu_custom_call.1} parent=5 // pred_fallthru
        _
      %p222 = scmp.lt.s32.totalorder %s23, 8
      // Predicated region
      $region17: #{tpu_custom_call.1} parent=5 // pred_check
        %p223 = pneg %p222
      $region18: #{tpu_custom_call.1} parent=5 // pred_check_branch
        %225 = sbr.rel (%p223) target = $region20
      $region19: #{tpu_custom_call.1} parent=5 // pred_region
        // Predicated region
        $region21: #{tpu_custom_call.1} parent=19 // pred_check
          %p226 = pneg %p100
        $region22: #{tpu_custom_call.1} parent=19 // pred_check_branch
          %228 = sbr.rel (%p226) target = $region24
        $region23: #{tpu_custom_call.1} parent=19 // pred_region
          %s229 = smul.u32 %s30, 8
          %s230 = sadd.s32 %s229, %s31
          %s231 = sld [smem:[#allocation4 + %s230]]
          %s232 = sld [smem:[#allocation5 + %s230]]
          %s233 = smul.u32 %s32, %s231
          %p234 = scmp.lt.s32.totalorder %s232, 7
          %s235 = scalar_select %p234, %s232, 7
          %p236 = scmp.lt.s32.totalorder %s233, 0
          %s237 = scalar_select %p236, %s233, 0
          %s238 = smul.addr %s237, 8
          %s239 = smul.addr %s235, 8
          %s240 = sadd.s32 %s238, %s239
          %s241 = smul.addr %s240, 8
          %s242 = scalar_lea.vmem %s3, %s241
          %s243 = smul.u32 %s30, 8
          %s244 = sadd.s32 %s243, %s31
          %s245 = sld [smem:[#allocation4 + %s244]]
          %s246 = sld [smem:[#allocation5 + %s244]]
          %s247 = smul.u32 %s32, %s245
        $region24: #{tpu_custom_call.1} parent=19 // pred_fallthru
          _
        // Predicated region
        $region25: #{tpu_custom_call.1} parent=19 // pred_check
          %p248 = pneg %p138
        $region26: #{tpu_custom_call.1} parent=19 // pred_check_branch
          %250 = sbr.rel (%p248) target = $region28
        $region27: #{tpu_custom_call.1} parent=19 // pred_region
          %s251 = smul.u32 %s30, 8
          %s252 = sadd.s32 %s251, %s31
          %s253 = sld [smem:[#allocation4 + %s252]]
          %s254 = sld [smem:[#allocation5 + %s252]]
          %s255 = smul.u32 %s32, %s253
          %p256 = scmp.lt.s32.totalorder %s254, 7
          %s257 = scalar_select %p256, %s254, 7
          %p258 = scmp.lt.s32.totalorder %s255, 0
          %s259 = scalar_select %p258, %s255, 0
          %s260 = smul.addr %s259, 8
          %s261 = smul.addr %s257, 8
          %s262 = sadd.s32 %s260, %s261
          %s263 = smul.addr %s262, 8
          %s264 = scalar_lea.vmem %s4, %s263
          %s265 = smul.u32 %s30, 8
          %s266 = sadd.s32 %s265, %s31
          %s267 = sld [smem:[#allocation4 + %s266]]
          %s268 = sld [smem:[#allocation5 + %s266]]
          %s269 = smul.u32 %s32, %s267
        $region28: #{tpu_custom_call.1} parent=19 // pred_fallthru
          _
        // Predicated region
        $region29: #{tpu_custom_call.1} parent=19 // pred_check
          %p270 = pneg %p166
        $region30: #{tpu_custom_call.1} parent=19 // pred_check_branch
          %272 = sbr.rel (%p270) target = $region32
        $region31: #{tpu_custom_call.1} parent=19 // pred_region
          %s273 = smul.u32 2, %s30
          %p274 = scmp.lt.s32.totalorder %s31, 7
          %s275 = scalar_select %p274, %s31, 7
          %p276 = scmp.lt.s32.totalorder %s273, 1
          %s277 = scalar_select %p276, %s273, 1
          %s278 = smul.addr %s275, 2
          %s279 = sadd.s32 %s277, %s278
          %s280 = smul.addr %s279, 8
          %s281 = scalar_lea.vmem %s5, %s280
          %s282 = smul.u32 2, %s30
        $region32: #{tpu_custom_call.1} parent=19 // pred_fallthru
          _
      $region20: #{tpu_custom_call.1} parent=5 // pred_fallthru
        _
      %p283 = scmp.le.s32.totalorder 1, %s23
      %p284 = scmp.lt.s32.totalorder %s23, 9
      %p285 = pnand %p283, %p284
      %p286 = pneg %p285
      // Predicated region
      $region33: #{tpu_custom_call.1} parent=5 // pred_check
        _
      $region34: #{tpu_custom_call.1} parent=5 // pred_check_branch
        %288 = sbr.rel (%p285) target = $region36
      $region35: #{tpu_custom_call.1} parent=5 // pred_region
        %s289 = ssub.s32 %s23, 1
        %s290 = smul.u32 2, %s33
        %p291 = scmp.lt.s32.totalorder %s290, 1
        %s292 = scalar_select %p291, %s290, 1
        %s293 = smul.addr %s292, 8
        %s294 = scalar_lea.vmem %s2, %s293
        %p295 = pneg %p68
        %p296 = pneg %p65
        %s297 = smul.u32 %s33, 8
        %s298 = sadd.s32 %s297, %s34
        %s299 = sld [smem:[#allocation4 + %s298]]
        %s300 = sld [smem:[#allocation5 + %s298]]
        %s301 = smul.u32 %s35, %s299
        %p302 = scmp.lt.s32.totalorder %s300, 7
        %s303 = scalar_select %p302, %s300, 7
        %p304 = scmp.lt.s32.totalorder %s301, 0
        %s305 = scalar_select %p304, %s301, 0
        %s306 = smul.addr %s305, 8
        %s307 = smul.addr %s303, 8
        %s308 = sadd.s32 %s306, %s307
        %s309 = smul.addr %s308, 8
        %s310 = scalar_lea.vmem %s3, %s309
        %p311 = pneg %p106
        %p312 = pneg %p103
        %s313 = smul.u32 %s33, 8
        %s314 = sadd.s32 %s313, %s34
        %s315 = sld [smem:[#allocation4 + %s314]]
        %s316 = sld [smem:[#allocation5 + %s314]]
        %s317 = smul.u32 %s35, %s315
        %p318 = scmp.lt.s32.totalorder %s316, 7
        %s319 = scalar_select %p318, %s316, 7
        %p320 = scmp.lt.s32.totalorder %s317, 0
        %s321 = scalar_select %p320, %s317, 0
        %s322 = smul.addr %s321, 8
        %s323 = smul.addr %s319, 8
        %s324 = sadd.s32 %s322, %s323
        %s325 = smul.addr %s324, 8
        %s326 = scalar_lea.vmem %s4, %s325
        %p327 = pneg %p144
        %p328 = pneg %p141
        %s329 = smul.u32 2, %s33
        %p330 = scmp.lt.s32.totalorder %s34, 7
        %s331 = scalar_select %p330, %s34, 7
        %p332 = scmp.lt.s32.totalorder %s329, 1
        %s333 = scalar_select %p332, %s329, 1
        %s334 = smul.addr %s331, 2
        %s335 = sadd.s32 %s333, %s334
        %s336 = smul.addr %s335, 8
        %s337 = scalar_lea.vmem %s5, %s336
        %p338 = pneg %p172
        %p339 = pneg %p169
        %p340 = pneg %p198
        %p341 = pneg %p195
        %s342 = smul.u32 2, %s33
        %p343 = scmp.lt.s32.totalorder %s342, 1
        %s344 = scalar_select %p343, %s342, 1
        %s345 = smul.addr %s344, 8
        %s346 = scalar_lea.vmem %s2, %s345
        %s347 = smul.u32 2, %s33
        %s348 = smul.u32 %s33, 8
        %s349 = sadd.s32 %s348, %s34
        %s350 = sld [smem:[#allocation4 + %s349]]
        %s351 = sld [smem:[#allocation5 + %s349]]
        %s352 = smul.u32 %s35, %s350
        %p353 = scmp.lt.s32.totalorder %s351, 7
        %s354 = scalar_select %p353, %s351, 7
        %p355 = scmp.lt.s32.totalorder %s352, 0
        %s356 = scalar_select %p355, %s352, 0
        %s357 = smul.addr %s356, 8
        %s358 = smul.addr %s354, 8
        %s359 = sadd.s32 %s357, %s358
        %s360 = smul.addr %s359, 8
        %s361 = scalar_lea.vmem %s3, %s360
        %s362 = smul.u32 %s33, 8
        %s363 = sadd.s32 %s362, %s34
        %s364 = sld [smem:[#allocation4 + %s363]]
        %s365 = sld [smem:[#allocation5 + %s363]]
        %s366 = smul.u32 %s35, %s364
        %s367 = smul.u32 %s33, 8
        %s368 = sadd.s32 %s367, %s34
        %s369 = sld [smem:[#allocation4 + %s368]]
        %s370 = sld [smem:[#allocation5 + %s368]]
        %s371 = smul.u32 %s35, %s369
        %p372 = scmp.lt.s32.totalorder %s370, 7
        %s373 = scalar_select %p372, %s370, 7
        %p374 = scmp.lt.s32.totalorder %s371, 0
        %s375 = scalar_select %p374, %s371, 0
        %s376 = smul.addr %s375, 8
        %s377 = smul.addr %s373, 8
        %s378 = sadd.s32 %s376, %s377
        %s379 = smul.addr %s378, 8
        %s380 = scalar_lea.vmem %s4, %s379
        %s381 = smul.u32 %s33, 8
        %s382 = sadd.s32 %s381, %s34
        %s383 = sld [smem:[#allocation4 + %s382]]
        %s384 = sld [smem:[#allocation5 + %s382]]
        %s385 = smul.u32 %s35, %s383
        %s386 = smul.u32 2, %s33
        %p387 = scmp.lt.s32.totalorder %s34, 7
        %s388 = scalar_select %p387, %s34, 7
        %p389 = scmp.lt.s32.totalorder %s386, 1
        %s390 = scalar_select %p389, %s386, 1
        %s391 = smul.addr %s388, 2
        %s392 = sadd.s32 %s390, %s391
        %s393 = smul.addr %s392, 8
        %s394 = scalar_lea.vmem %s5, %s393
        %s395 = smul.u32 2, %s33
        %s396 = smul.u32 2, %s33
        %p397 = scmp.eq.s32.totalorder %s34, 0
        %p398 = scmp.eq.s32.totalorder %s35, 0
        %p399 = pnand %p397, %p398
        %p400 = pneg %p399
        // Predicated region
        $region37: #{tpu_custom_call.1} parent=35 // pred_check
          _
        $region38: #{tpu_custom_call.1} parent=35 // pred_check_branch
          %402 = sbr.rel (%p399) target = $region40
        $region39: #{tpu_custom_call.1} parent=35 // pred_region
          %vm403 = vcmask 261120
          %404 = vst.msk [vmem:[#allocation2] sm:$0xff] %vm403, 0.0
          %405 = vst.msk [vmem:[#allocation2 + $0x8] sm:$0xff] %vm403, 0.0
        $region40: #{tpu_custom_call.1} parent=35 // pred_fallthru
          _
        %s406 = smul.u32 %s33, 8
        %s407 = sadd.s32 %s406, %s34
        %s408 = sld [smem:[#allocation4 + %s407]]
        %p409 = scmp.eq.s32.totalorder %s408, 1
        // Predicated region
        $region41: #{tpu_custom_call.1} parent=35 // pred_check
          %p410 = pneg %p409
        $region42: #{tpu_custom_call.1} parent=35 // pred_check_branch
          %412 = sbr.rel (%p410) target = $region44
        $region43: #{tpu_custom_call.1} parent=35 // pred_region
          %v413 = vld [vmem:[%s346] sm:$0xff]
          %v414 = vld [vmem:[%s346 + $0x8] sm:$0xff]
          %v415 = vld [vmem:[%s361] sm:$0xff]
          %v416 = vld [vmem:[%s361 + $0x8] sm:$0xff]
          %v417 = vld [vmem:[%s361 + $0x10] sm:$0xff]
          %v418 = vld [vmem:[%s361 + $0x18] sm:$0xff]
          %vm419 = vcmask 261120
          %v421 = vsel %vm419, %v413, 0
          %v424 = vsel %vm419, %v414, 0
          %426 = vmatprep.subr.mxu0 0.0
          %427 = vmatpush1.msra.mxu0 %v415
          %428 = vmatprep.subr.mxu0 0.0
          %429 = vmatpush1.msra.mxu0 %v416
          %430 = vmatprep.subr.mxu0 0.0
          %431 = vmatpush1.msra.mxu0 %v417
          %432 = vmatprep.subr.mxu0 0.0
          %433 = vmatpush1.msra.mxu0 %v418
          %434 = vmatprep.subr.mxu0 0.0
          %435 = vmatpush1.msra.mxu0 0.0
          %436 = vmatprep.subr.mxu0 0.0
          %437 = vmatpush1.msra.mxu0 0.0
          %438 = vmatprep.subr.mxu0 0.0
          %439 = vmatpush1.msra.mxu0 0.0
          %440 = vmatprep.subr.mxu0 0.0
          %441 = vmatpush1.msra.mxu0 0.0
          %442 = vmatprep.subr.mxu0 0.0
          %443 = vmatpush1.msra.mxu0 0.0
          %444 = vmatprep.subr.mxu0 0.0
          %445 = vmatpush1.msra.mxu0 0.0
          %446 = vmatprep.subr.mxu0 0.0
          %447 = vmatpush1.msra.mxu0 0.0
          %448 = vmatprep.subr.mxu0 0.0
          %449 = vmatpush1.msra.mxu0 0.0
          %450 = vmatprep.subr.mxu0 0.0
          %451 = vmatpush1.msra.mxu0 0.0
          %452 = vmatprep.subr.mxu0 0.0
          %453 = vmatpush1.msra.mxu0 0.0
          %454 = vmatprep.subr.mxu0 0.0
          %455 = vmatpush1.msra.mxu0 0.0
          %456 = vmatprep.subr.mxu0 0.0
          %457 = vmatpush1.msra.mxu0 0.0
          %458 = vmatprep.subr.mxu0 0.0
          %459 = vmatpush1.msra.mxu0 0.0
          %460 = vmatprep.subr.mxu0 0.0
          %461 = vmatpush1.msra.mxu0 0.0
          %462 = vmatprep.subr.mxu0 0.0
          %463 = vmatpush1.msra.mxu0 0.0
          %464 = vmatprep.subr.mxu0 0.0
          %465 = vmatpush1.msra.mxu0 0.0
          %466 = vmatprep.subr.mxu0 0.0
          %467 = vmatpush1.msra.mxu0 0.0
          %468 = vmatprep.subr.mxu0 0.0
          %469 = vmatpush1.msra.mxu0 0.0
          %470 = vmatprep.subr.mxu0 0.0
          %471 = vmatpush1.msra.mxu0 0.0
          %472 = vmatprep.subr.mxu0 0.0
          %473 = vmatpush1.msra.mxu0 0.0
          %474 = vmatprep.subr.mxu0 0.0
          %475 = vmatpush1.msra.mxu0 0.0
          %476 = vmatprep.subr.mxu0 0.0
          %477 = vmatpush1.msra.mxu0 0.0
          %478 = vmatprep.subr.mxu0 0.0
          %479 = vmatpush1.msra.mxu0 0.0
          %480 = vmatprep.subr.mxu0 0.0
          %481 = vmatpush1.msra.mxu0 0.0
          %482 = vmatprep.subr.mxu0 0.0
          %483 = vmatpush1.msra.mxu0 0.0
          %484 = vmatprep.subr.mxu0 0.0
          %485 = vmatpush1.msra.mxu0 0.0
          %486 = vmatprep.subr.mxu0 0.0
          %487 = vmatpush1.msra.mxu0 0.0
          %488 = vmatprep.subr.mxu0 0.0
          %489 = vmatpush1.msra.mxu0 0.0
          %490 = vmatprep.mubr.f32.mxu0 0.0
          %491 = vmatmul.mubr.f32.gmra.mrb[0].mxu0 %v421
          %v492 = vpop.f32.mrb[0].mxu0
          %v493 = vadd.f32 0.0, %v492
          %v494 = vpop.f32.mrb[0].mxu0
          %495 = vmatprep.mubr.f32.mxu0 0.0
          %496 = vmatmul.mubr.f32.gmra.mrb[0].mxu0 %v424
          %v497 = vpop.f32.mrb[0].mxu0
          %v498 = vadd.f32 0.0, %v497
          %v499 = vpop.f32.mrb[0].mxu0
          %500 = vdwg.mxu0
          %v501 = vld [vmem:[%s361 + $0x20] sm:$0xff]
          %v502 = vld [vmem:[%s361 + $0x28] sm:$0xff]
          %v503 = vld [vmem:[%s361 + $0x30] sm:$0xff]
          %v504 = vld [vmem:[%s361 + $0x38] sm:$0xff]
          %505 = vmatprep.subr.mxu0 0.0
          %506 = vmatpush1.msra.mxu0 %v501
          %507 = vmatprep.subr.mxu0 0.0
          %508 = vmatpush1.msra.mxu0 %v502
          %509 = vmatprep.subr.mxu0 0.0
          %510 = vmatpush1.msra.mxu0 %v503
          %511 = vmatprep.subr.mxu0 0.0
          %512 = vmatpush1.msra.mxu0 %v504
          %513 = vmatprep.subr.mxu0 0.0
          %514 = vmatpush1.msra.mxu0 0.0
          %515 = vmatprep.subr.mxu0 0.0
          %516 = vmatpush1.msra.mxu0 0.0
          %517 = vmatprep.subr.mxu0 0.0
          %518 = vmatpush1.msra.mxu0 0.0
          %519 = vmatprep.subr.mxu0 0.0
          %520 = vmatpush1.msra.mxu0 0.0
          %521 = vmatprep.subr.mxu0 0.0
          %522 = vmatpush1.msra.mxu0 0.0
          %523 = vmatprep.subr.mxu0 0.0
          %524 = vmatpush1.msra.mxu0 0.0
          %525 = vmatprep.subr.mxu0 0.0
          %526 = vmatpush1.msra.mxu0 0.0
          %527 = vmatprep.subr.mxu0 0.0
          %528 = vmatpush1.msra.mxu0 0.0
          %529 = vmatprep.subr.mxu0 0.0
          %530 = vmatpush1.msra.mxu0 0.0
          %531 = vmatprep.subr.mxu0 0.0
          %532 = vmatpush1.msra.mxu0 0.0
          %533 = vmatprep.subr.mxu0 0.0
          %534 = vmatpush1.msra.mxu0 0.0
          %535 = vmatprep.subr.mxu0 0.0
          %536 = vmatpush1.msra.mxu0 0.0
          %537 = vmatprep.subr.mxu0 0.0
          %538 = vmatpush1.msra.mxu0 0.0
          %539 = vmatprep.subr.mxu0 0.0
          %540 = vmatpush1.msra.mxu0 0.0
          %541 = vmatprep.subr.mxu0 0.0
          %542 = vmatpush1.msra.mxu0 0.0
          %543 = vmatprep.subr.mxu0 0.0
          %544 = vmatpush1.msra.mxu0 0.0
          %545 = vmatprep.subr.mxu0 0.0
          %546 = vmatpush1.msra.mxu0 0.0
          %547 = vmatprep.subr.mxu0 0.0
          %548 = vmatpush1.msra.mxu0 0.0
          %549 = vmatprep.subr.mxu0 0.0
          %550 = vmatpush1.msra.mxu0 0.0
          %551 = vmatprep.subr.mxu0 0.0
          %552 = vmatpush1.msra.mxu0 0.0
          %553 = vmatprep.subr.mxu0 0.0
          %554 = vmatpush1.msra.mxu0 0.0
          %555 = vmatprep.subr.mxu0 0.0
          %556 = vmatpush1.msra.mxu0 0.0
          %557 = vmatprep.subr.mxu0 0.0
          %558 = vmatpush1.msra.mxu0 0.0
          %559 = vmatprep.subr.mxu0 0.0
          %560 = vmatpush1.msra.mxu0 0.0
          %561 = vmatprep.subr.mxu0 0.0
          %562 = vmatpush1.msra.mxu0 0.0
          %563 = vmatprep.subr.mxu0 0.0
          %564 = vmatpush1.msra.mxu0 0.0
          %565 = vmatprep.subr.mxu0 0.0
          %566 = vmatpush1.msra.mxu0 0.0
          %567 = vmatprep.subr.mxu0 0.0
          %568 = vmatpush1.msra.mxu0 0.0
          %569 = vmatprep.mubr.f32.mxu0 0.0
          %570 = vmatmul.mubr.f32.gmra.mrb[0].mxu0 %v421
          %v571 = vpop.f32.mrb[0].mxu0
          %v572 = vadd.f32 0.0, %v571
          %v573 = vpop.f32.mrb[0].mxu0
          %574 = vmatprep.mubr.f32.mxu0 0.0
          %575 = vmatmul.mubr.f32.gmra.mrb[0].mxu0 %v424
          %v576 = vpop.f32.mrb[0].mxu0
          %v577 = vadd.f32 0.0, %v576
          %v578 = vpop.f32.mrb[0].mxu0
          %579 = vdwg.mxu0
          %v580 = vxor.u32 %v493, 2147483648
          %v581 = vxor.u32 %v498, 2147483648
          %v582 = vmul.f32 %v580, 1.442695
          %v583 = vpow.pop %v582
          %v584 = vmul.f32 %v581, 1.442695
          %v585 = vpow.pop %v584
          %v586 = vadd.f32 %v583, 1.0
          %v587 = vadd.f32 %v585, 1.0
          %v588 = vrcp.pop %v586
          %v589 = vmul.f32 1.0, %v588
          %v590 = vrcp.pop %v587
          %v591 = vmul.f32 1.0, %v590
          %v592 = vmul.f32 %v493, %v589
          %v593 = vmul.f32 %v498, %v591
          %v594 = vmul.f32 %v592, %v572
          %v595 = vmul.f32 %v593, %v577
          %v596 = vld [vmem:[%s394] sm:$0xff]
          %v597 = vld [vmem:[%s394 + $0x8] sm:$0xff]
          %599 = vset.pattern.permute.xlu0 0
          %600 = vperm.xlu0 %599, %v596
          %v601 = vpop.permute.xlu0 %600
          %604 = vset.pattern.permute.xlu0 0
          %605 = vperm.xlu0 %604, %v597
          %v606 = vpop.permute.xlu0 %605
          %v608 = vmul.f32 %v594, %v601
          %v609 = vmul.f32 %v595, %v606
          %v610 = vld [vmem:[#allocation2] sm:$0xff]
          %v611 = vld [vmem:[#allocation2 + $0x8] sm:$0xff]
          %v612 = vld [vmem:[%s380] sm:$0xff]
          %v613 = vld [vmem:[%s380 + $0x8] sm:$0xff]
          %v614 = vld [vmem:[%s380 + $0x10] sm:$0xff]
          %v615 = vld [vmem:[%s380 + $0x18] sm:$0xff]
          %v616 = vld [vmem:[%s380 + $0x20] sm:$0xff]
          %v617 = vld [vmem:[%s380 + $0x28] sm:$0xff]
          %v618 = vld [vmem:[%s380 + $0x30] sm:$0xff]
          %v619 = vld [vmem:[%s380 + $0x38] sm:$0xff]
          %vm620 = vcmask 523264
          %v622 = vsel %vm620, %v608, 0
          %v625 = vsel %vm620, %v609, 0
          %627 = vmatprep.subr.mxu0 0.0
          %628 = vmatpush1.msra.mxu0 %v612
          %629 = vmatprep.subr.mxu0 0.0
          %630 = vmatpush1.msra.mxu0 %v613
          %631 = vmatprep.subr.mxu0 0.0
          %632 = vmatpush1.msra.mxu0 %v614
          %633 = vmatprep.subr.mxu0 0.0
          %634 = vmatpush1.msra.mxu0 %v615
          %635 = vmatprep.subr.mxu0 0.0
          %636 = vmatpush1.msra.mxu0 %v616
          %637 = vmatprep.subr.mxu0 0.0
          %638 = vmatpush1.msra.mxu0 %v617
          %639 = vmatprep.subr.mxu0 0.0
          %640 = vmatpush1.msra.mxu0 %v618
          %641 = vmatprep.subr.mxu0 0.0
          %642 = vmatpush1.msra.mxu0 %v619
          %643 = vmatprep.subr.mxu0 0.0
          %644 = vmatpush1.msra.mxu0 0.0
          %645 = vmatprep.subr.mxu0 0.0
          %646 = vmatpush1.msra.mxu0 0.0
          %647 = vmatprep.subr.mxu0 0.0
          %648 = vmatpush1.msra.mxu0 0.0
          %649 = vmatprep.subr.mxu0 0.0
          %650 = vmatpush1.msra.mxu0 0.0
          %651 = vmatprep.subr.mxu0 0.0
          %652 = vmatpush1.msra.mxu0 0.0
          %653 = vmatprep.subr.mxu0 0.0
          %654 = vmatpush1.msra.mxu0 0.0
          %655 = vmatprep.subr.mxu0 0.0
          %656 = vmatpush1.msra.mxu0 0.0
          %657 = vmatprep.subr.mxu0 0.0
          %658 = vmatpush1.msra.mxu0 0.0
          %659 = vmatprep.subr.mxu0 0.0
          %660 = vmatpush1.msra.mxu0 0.0
          %661 = vmatprep.subr.mxu0 0.0
          %662 = vmatpush1.msra.mxu0 0.0
          %663 = vmatprep.subr.mxu0 0.0
          %664 = vmatpush1.msra.mxu0 0.0
          %665 = vmatprep.subr.mxu0 0.0
          %666 = vmatpush1.msra.mxu0 0.0
          %667 = vmatprep.subr.mxu0 0.0
          %668 = vmatpush1.msra.mxu0 0.0
          %669 = vmatprep.subr.mxu0 0.0
          %670 = vmatpush1.msra.mxu0 0.0
          %671 = vmatprep.subr.mxu0 0.0
          %672 = vmatpush1.msra.mxu0 0.0
          %673 = vmatprep.subr.mxu0 0.0
          %674 = vmatpush1.msra.mxu0 0.0
          %675 = vmatprep.subr.mxu0 0.0
          %676 = vmatpush1.msra.mxu0 0.0
          %677 = vmatprep.subr.mxu0 0.0
          %678 = vmatpush1.msra.mxu0 0.0
          %679 = vmatprep.subr.mxu0 0.0
          %680 = vmatpush1.msra.mxu0 0.0
          %681 = vmatprep.subr.mxu0 0.0
          %682 = vmatpush1.msra.mxu0 0.0
          %683 = vmatprep.subr.mxu0 0.0
          %684 = vmatpush1.msra.mxu0 0.0
          %685 = vmatprep.subr.mxu0 0.0
          %686 = vmatpush1.msra.mxu0 0.0
          %687 = vmatprep.subr.mxu0 0.0
          %688 = vmatpush1.msra.mxu0 0.0
          %689 = vmatprep.subr.mxu0 0.0
          %690 = vmatpush1.msra.mxu0 0.0
          %691 = vmatprep.mubr.f32.mxu0 0.0
          %692 = vmatmul.mubr.f32.gmra.mrb[0].mxu0 %v622
          %v693 = vpop.f32.mrb[0].mxu0
          %v694 = vadd.f32 0.0, %v693
          %v695 = vpop.f32.mrb[0].mxu0
          %696 = vmatprep.mubr.f32.mxu0 0.0
          %697 = vmatmul.mubr.f32.gmra.mrb[0].mxu0 %v625
          %v698 = vpop.f32.mrb[0].mxu0
          %v699 = vadd.f32 0.0, %v698
          %v700 = vpop.f32.mrb[0].mxu0
          %701 = vdwg.mxu0
          %v702 = vadd.f32 %v610, %v694
          %v703 = vadd.f32 %v611, %v699
          %704 = vst.msk [vmem:[#allocation2] sm:$0xff] %vm419, %v702
          %705 = vst.msk [vmem:[#allocation2 + $0x8] sm:$0xff] %vm419, %v703
        $region44: #{tpu_custom_call.1} parent=35 // pred_fallthru
          _
        %p706 = scmp.eq.s32.totalorder %s34, 7
        %p707 = pnand %p706, %p398
        %p708 = pneg %p707
        // Predicated region
        $region45: #{tpu_custom_call.1} parent=35 // pred_check
          _
        $region46: #{tpu_custom_call.1} parent=35 // pred_check_branch
          %710 = sbr.rel (%p707) target = $region48
        $region47: #{tpu_custom_call.1} parent=35 // pred_region
          %v711 = vld [vmem:[#allocation2] sm:$0xff]
          %v712 = vld [vmem:[#allocation2 + $0x8] sm:$0xff]
          %vm713 = vcmask 261120
          %714 = vst.msk [vmem:[#allocation6] sm:$0xff] %vm713, %v711
          %715 = vst.msk [vmem:[#allocation6 + $0x8] sm:$0xff] %vm713, %v712
        $region48: #{tpu_custom_call.1} parent=35 // pred_fallthru
          _
        // Predicated region
        $region49: #{tpu_custom_call.1} parent=35 // pred_check
          %p716 = pneg %p195
        $region50: #{tpu_custom_call.1} parent=35 // pred_check_branch
          %718 = sbr.rel (%p716) target = $region52
        $region51: #{tpu_custom_call.1} parent=35 // pred_region
          %s719 = smul.u32 2, %s33
          %s721 = ssub.s32 256, 256
          %722 = vsyncadd [#allocation7], %s721
          %s723 = smul.addr %s719, 128
          %s724 = scalar_lea.hbm %s6, %s723
          %s725 = sshll.u32 [#allocation6], 4
          %s726 = int_to_ptr.vmem [resolvable:$true] %s725
          %731 = dma.vmem_to_hbm [thread:$0]  %s726, 256, %s724, [#allocation7], 128, 128, 8
        $region52: #{tpu_custom_call.1} parent=35 // pred_fallthru
          _
        // Predicated region
        $region53: #{tpu_custom_call.1} parent=35 // pred_check
          %p732 = pneg %p195
        $region54: #{tpu_custom_call.1} parent=35 // pred_check_branch
          %734 = sbr.rel (%p732) target = $region56
        $region55: #{tpu_custom_call.1} parent=35 // pred_region
          %735 = dma.done [#allocation7], 256
        $region56: #{tpu_custom_call.1} parent=35 // pred_fallthru
          _
      $region36: #{tpu_custom_call.1} parent=5 // pred_fallthru
        _
      %p736 = scmp.le.s32.totalorder 2, %s23
      // Predicated region
      $region57: #{tpu_custom_call.1} parent=5 // pred_check
        %p737 = pneg %p736
      $region58: #{tpu_custom_call.1} parent=5 // pred_check_branch
        %739 = sbr.rel (%p737) target = $region60
      $region59: #{tpu_custom_call.1} parent=5 // pred_region
        %s740 = ssub.s32 %s23, 2
      $region60: #{tpu_custom_call.1} parent=5 // pred_fallthru
        _
    $region6: #{tpu_custom_call.1} parent=1 // loop_footer
      %s27 = sadd.s32 1, %s23
    $region7: #{tpu_custom_call.1} parent=1 // loop_footer_branch
      %22 = sbr.rel target = $region3
    $region8: #{tpu_custom_call.1} parent=1 // loop_exit
      _
    %741 = vsyncpa [#allocation7], 1
    %s742 = scalar_lea.sflag [#allocation7], 1
    %743 = vsyncpa %s742, 1

</llo_original>
